<compile_context>
chip_gen: v7x
topology: tpu7x:2x2x1
jax: 0.10.0
libtpu: 0.0.40
codegen_flags: <defaults>
</compile_context>

<pallas_src>
import functools

import jax
import jax.numpy as jnp
import numpy as np
from jax.experimental import pallas as pl
from jax.experimental.pallas import tpu as pltpu


def _dsce_kernel(logits_ref, targets_ref, out_ref, *,
                 label_smoothing, ignore_index, n_rows):
    i = pl.program_id(0)

    raw = logits_ref[...]                     # (TM, C) input dtype (f32/bf16)
    t = targets_ref[...]                      # (TM, 1) int32
    tm, c = raw.shape

    # ---- log-sum-exp over the class (lane) axis ----------------------------
    # Max over the raw-dtype block; the f32 cast fuses into the subtract.
    m = jnp.max(raw, axis=-1, keepdims=True).astype(jnp.float32)    # (TM, 1)
    z = raw.astype(jnp.float32) - m                                  # (TM, C)
    lse = jnp.log(jnp.sum(jnp.exp(z), axis=-1, keepdims=True))       # (TM, 1)

    # ---- distance-smoothed soft targets -------------------------------------
    col = jax.lax.broadcasted_iota(jnp.int32, (tm, c), 1)
    diff = col - t                                                   # (TM, C)
    is_target = diff == 0
    dist = jnp.abs(diff).astype(jnp.float32)
    # recip is exactly 1.0 at the target column (dist clamped to 1), so the
    # normalizer over the non-target columns is sum(recip) - 1: no zeroing
    # select, no extra (TM,C) temporary.
    recip = pl.reciprocal(jnp.maximum(dist, 1.0), approx=True)       # EUP vrcp
    denom = jnp.sum(recip, axis=-1, keepdims=True) - 1.0             # (TM, 1)
    scale = pl.reciprocal(denom) * label_smoothing                   # (TM, 1)
    smooth = jnp.where(is_target, 1.0 - label_smoothing, recip * scale)

    # ---- soft-target cross entropy per row ----------------------------------
    # sum(smooth) == 1  =>  -sum(smooth*(z - lse)) == lse - sum(smooth*z)
    per_row = lse - jnp.sum(smooth * z, axis=-1, keepdims=True)      # (TM, 1)

    # ---- ignore_index + ragged-tail mask (select, never arithmetic) ---------
    row = jax.lax.broadcasted_iota(jnp.int32, (tm, 1), 0)
    valid = (t != ignore_index) & ((i * tm + row) < n_rows)          # (TM, 1)
    per_row = jnp.where(valid, per_row, 0.0)   # kills NaN/Inf from ragged tail

    # ---- per-block partials: lane-dense unmasked (8,128) store --------------
    loss_sum = jnp.sum(per_row)
    cnt = jnp.sum(valid.astype(jnp.float32))
    r8 = jax.lax.broadcasted_iota(jnp.int32, (8, 128), 0)
    l128 = jax.lax.broadcasted_iota(jnp.int32, (8, 128), 1)
    out_ref[...] = jnp.where(
        (r8 == 0) & (l128 == 0), loss_sum,
        jnp.where((r8 == 1) & (l128 == 0), cnt, 0.0))


def _vmem_capacity_bytes():
    # Generation-aware physical VMEM (v5e/v6e: 128 MiB, v7x: 64 MiB per TC).
    try:
        cap = getattr(pltpu.get_tpu_info(), "vmem_capacity_bytes", None)
        if cap:
            return int(cap)
    except Exception:
        pass
    return 64 * 1024 * 1024                   # conservative (v7x-sized) fallback


def _per_row_vmem_bytes(c, itemsize):
    # 2x (double-buffered) logits block + 2x lane-padded (->128 lanes) targets
    # block + ~4 compiler-materialized f32 (TM,C) temporaries (z/exp/recip/smooth).
    return 2 * c * itemsize + 2 * 128 * 4 + 4 * c * 4


def _pick_block_rows(c, itemsize, vmem_cap):
    budget = vmem_cap // 3                    # leave >half of VMEM as headroom
    rows = budget // _per_row_vmem_bytes(c, itemsize)
    rows = max(8, min(int(rows), 8192))
    return (rows // 8) * 8


def distance_smoothed_cross_entropy(logits, targets, *,
                                    label_smoothing=0.1,
                                    ignore_index=-100,
                                    reduction="mean",
                                    block_rows=None):
    """logits: (N, C) float (f32 or bf16); targets: (N,) int. Scalar loss."""
    n, c = logits.shape
    itemsize = jnp.dtype(logits.dtype).itemsize
    vmem_cap = _vmem_capacity_bytes()

    if block_rows is None:
        block_rows = _pick_block_rows(c, itemsize, vmem_cap)
    if n <= 8:
        block_rows = n                                 # block == full row extent
    else:
        block_rows = max(8, min(block_rows, (n // 8) * 8))
        # Keep >=2 grid steps when the row count allows so the "parallel" axis
        # can shard across both v7x TensorCores (harmless on 1-TC chips).
        if pl.cdiv(n, block_rows) < 2 and n >= 16:
            block_rows = max(8, ((pl.cdiv(n, 2) + 7) // 8) * 8)

    n_blocks = pl.cdiv(n, block_rows)
    targets2d = targets.astype(jnp.int32).reshape(n, 1)

    kernel = functools.partial(_dsce_kernel,
                               label_smoothing=float(label_smoothing),
                               ignore_index=int(ignore_index),
                               n_rows=int(n))

    working_set = block_rows * _per_row_vmem_bytes(c, itemsize)
    vmem_limit = int(min(int(vmem_cap * 0.9),
                         max(32 << 20, working_set + (16 << 20))))

    cost = pl.CostEstimate(
        flops=14 * n * c,                       # sub/abs/cmp/select/mul/add chain
        transcendentals=2 * n * c,              # exp + approx reciprocal
        bytes_accessed=n * c * itemsize + n * 4 + n_blocks * 8 * 128 * 4)

    partials = pl.pallas_call(
        kernel,
        out_shape=jax.ShapeDtypeStruct((8, n_blocks * 128), jnp.float32),
        grid_spec=pltpu.PrefetchScalarGridSpec(
            num_scalar_prefetch=0,
            grid=(n_blocks,),
            in_specs=[
                pl.BlockSpec((block_rows, c), lambda i: (i, 0)),
                pl.BlockSpec((block_rows, 1), lambda i: (i, 0)),
            ],
            out_specs=pl.BlockSpec((8, 128), lambda i: (0, i)),
        ),
        compiler_params=pltpu.CompilerParams(
            dimension_semantics=("parallel",),
            vmem_limit_bytes=vmem_limit),
        cost_estimate=cost,
    )(logits, targets2d)

    loss_sum = jnp.sum(partials[0, :])
    valid_cnt = jnp.sum(partials[1, :])
    if reduction == "mean":
        return loss_sum / valid_cnt
    elif reduction == "sum":
        return loss_sum
    else:
        # TODO(synk): reduction='none' would need per-row outputs (unfused).
        raise NotImplementedError("only 'mean'/'sum' reductions implemented")


def _reference(logits, targets, label_smoothing=0.1, ignore_index=-100):
    # pure-JAX reference mirroring the PyTorch forward
    n, c = logits.shape
    col = jnp.arange(c)[None, :]
    dist = jnp.abs(col - targets[:, None]).astype(jnp.float32)
    inv = jnp.where(dist == 0.0, 0.0, 1.0 / jnp.maximum(dist, 1.0))
    inv_norm = inv / jnp.sum(inv, axis=-1, keepdims=True)
    smooth = inv_norm * label_smoothing
    smooth = jnp.where(col == targets[:, None], 1.0 - label_smoothing, smooth)
    logp = jax.nn.log_softmax(logits.astype(jnp.float32), axis=-1)
    loss = -jnp.sum(smooth * logp, axis=-1)
    mask = (targets != ignore_index)
    return jnp.sum(jnp.where(mask, loss, 0.0)) / jnp.sum(mask.astype(jnp.float32))


if __name__ == "__main__":
    key = jax.random.PRNGKey(0)
    k1, k2 = jax.random.split(key)
    # N deliberately not a multiple of the tile to exercise the ragged mask;
    # two rows carry ignore_index to exercise the masking path.
    N, C = 37, 128
    logits = jax.random.normal(k1, (N, C), dtype=jnp.float32)
    targets = jax.random.randint(k2, (N,), 0, C, dtype=jnp.int32)
    targets = targets.at[5].set(-100).at[20].set(-100)

    loss = distance_smoothed_cross_entropy(logits, targets,
                                           label_smoothing=0.1,
                                           ignore_index=-100,
                                           reduction="mean")
    loss = jax.block_until_ready(loss)

    ref = jax.block_until_ready(_reference(logits, targets))
    # Tolerance relaxed vs f32-exact because the smoothing weights use the
    # approx (EUP vrcp) reciprocal; deviation is ~1e-4 relative at most.
    assert np.allclose(np.asarray(loss), np.asarray(ref), rtol=1e-3, atol=1e-3), (
        f"mismatch: kernel={loss} ref={ref}")

    print("KERNEL_OK")
</pallas_src>

<mosaic_0001>
module attributes {stable_mosaic.version = 11 : i64} {
  func.func @_dsce_kernel(%arg0: i32, %arg1: memref<32x128xf32, #tpu.memory_space<vmem>>, %arg2: memref<32x1xi32, #tpu.memory_space<vmem>>, %arg3: memref<8x128xf32, #tpu.memory_space<vmem>>) attributes {dimension_semantics = [#tpu.dimension_semantics<parallel>], iteration_bounds = array<i64: 2>, scalar_prefetch = 0 : i64, scratch_operands = 0 : i64, tpu.core_type = #tpu.core_type<tc>, window_params = [{transform_indices = @transform_0, window_bounds = array<i64: 32, 128>}, {transform_indices = @transform_1, window_bounds = array<i64: 32, 1>}, {transform_indices = @transform_2, window_bounds = array<i64: 8, 128>}]} {
    %c0 = arith.constant 0 : index
    %c0_0 = arith.constant 0 : index
    %0 = vector.load %arg1[%c0, %c0_0] : memref<32x128xf32, #tpu.memory_space<vmem>>, vector<32x128xf32>
    %c0_1 = arith.constant 0 : index
    %c0_2 = arith.constant 0 : index
    %1 = vector.load %arg2[%c0_1, %c0_2] : memref<32x1xi32, #tpu.memory_space<vmem>>, vector<32x1xi32>
    %cst = arith.constant dense<0xFF800000> : vector<32xf32>
    %2 = vector.multi_reduction <maximumf>, %0, %cst [1] : vector<32x128xf32> to vector<32xf32>
    %3 = vector.shape_cast %2 : vector<32xf32> to vector<32x1xf32>
    %4 = vector.broadcast %3 : vector<32x1xf32> to vector<32x128xf32>
    %5 = arith.subf %0, %4 : vector<32x128xf32>
    %6 = math.exp %5 : vector<32x128xf32>
    %cst_3 = arith.constant dense<0.000000e+00> : vector<32xf32>
    %7 = vector.multi_reduction <add>, %6, %cst_3 [1] : vector<32x128xf32> to vector<32xf32>
    %8 = vector.shape_cast %7 : vector<32xf32> to vector<32x1xf32>
    %9 = math.log %8 : vector<32x1xf32>
    %10 = tpu.iota {dimensions = array<i32: 1>} : vector<32x128xi32>
    %11 = vector.broadcast %1 : vector<32x1xi32> to vector<32x128xi32>
    %12 = arith.subi %10, %11 : vector<32x128xi32>
    %c0_i32 = arith.constant 0 : i32
    %13 = vector.broadcast %c0_i32 : i32 to vector<32x128xi32>
    %14 = arith.cmpi eq, %12, %13 : vector<32x128xi32>
    %15 = math.absi %12 : vector<32x128xi32>
    %16 = arith.sitofp %15 : vector<32x128xi32> to vector<32x128xf32>
    %cst_4 = arith.constant 1.000000e+00 : f32
    %17 = vector.broadcast %cst_4 : f32 to vector<32x128xf32>
    %18 = arith.maximumf %16, %17 : vector<32x128xf32>
    %19 = tpu.reciprocal %18 {approx = true} : vector<32x128xf32> -> vector<32x128xf32>
    %cst_5 = arith.constant dense<0.000000e+00> : vector<32xf32>
    %20 = vector.multi_reduction <add>, %19, %cst_5 [1] : vector<32x128xf32> to vector<32xf32>
    %21 = vector.shape_cast %20 : vector<32xf32> to vector<32x1xf32>
    %cst_6 = arith.constant 1.000000e+00 : f32
    %22 = vector.broadcast %cst_6 : f32 to vector<32x1xf32>
    %23 = arith.subf %21, %22 : vector<32x1xf32>
    %24 = tpu.reciprocal %23 : vector<32x1xf32> -> vector<32x1xf32>
    %cst_7 = arith.constant 1.000000e-01 : f32
    %25 = vector.broadcast %cst_7 : f32 to vector<32x1xf32>
    %26 = arith.mulf %24, %25 : vector<32x1xf32>
    %27 = vector.broadcast %26 : vector<32x1xf32> to vector<32x128xf32>
    %28 = arith.mulf %19, %27 : vector<32x128xf32>
    %cst_8 = arith.constant 0.899999976 : f32
    %29 = vector.broadcast %cst_8 : f32 to vector<32x128xf32>
    %30 = arith.select %14, %29, %28 : vector<32x128xi1>, vector<32x128xf32>
    %31 = arith.mulf %30, %5 : vector<32x128xf32>
    %cst_9 = arith.constant dense<0.000000e+00> : vector<32xf32>
    %32 = vector.multi_reduction <add>, %31, %cst_9 [1] : vector<32x128xf32> to vector<32xf32>
    %33 = vector.shape_cast %32 : vector<32xf32> to vector<32x1xf32>
    %34 = arith.subf %9, %33 : vector<32x1xf32>
    %35 = tpu.iota {dimensions = array<i32: 0>} : vector<32x1xi32>
    %c-100_i32 = arith.constant -100 : i32
    %36 = vector.broadcast %c-100_i32 : i32 to vector<32x1xi32>
    %37 = arith.cmpi ne, %1, %36 : vector<32x1xi32>
    %c32_i32 = arith.constant 32 : i32
    %38 = arith.muli %arg0, %c32_i32 : i32
    %39 = vector.broadcast %38 : i32 to vector<32x1xi32>
    %40 = arith.addi %39, %35 : vector<32x1xi32>
    %c37_i32 = arith.constant 37 : i32
    %41 = vector.broadcast %c37_i32 : i32 to vector<32x1xi32>
    %42 = arith.cmpi slt, %40, %41 : vector<32x1xi32>
    %43 = arith.andi %37, %42 : vector<32x1xi1>
    %cst_10 = arith.constant 0.000000e+00 : f32
    %44 = vector.broadcast %cst_10 : f32 to vector<32x1xf32>
    %45 = arith.select %43, %34, %44 : vector<32x1xi1>, vector<32x1xf32>
    %46 = vector.shape_cast %45 : vector<32x1xf32> to vector<1x32x1xf32>
    %cst_11 = arith.constant dense<0.000000e+00> : vector<1xf32>
    %47 = vector.multi_reduction <add>, %46, %cst_11 [1, 2] : vector<1x32x1xf32> to vector<1xf32>
    %48 = vector.shape_cast %47 : vector<1xf32> to vector<1x1x1xf32>
    %49 = vector.extract %48[0, 0, 0] : f32 from vector<1x1x1xf32>
    %50 = arith.extui %43 : vector<32x1xi1> to vector<32x1xi32>
    %51 = arith.sitofp %50 : vector<32x1xi32> to vector<32x1xf32>
    %52 = vector.shape_cast %51 : vector<32x1xf32> to vector<1x32x1xf32>
    %cst_12 = arith.constant dense<0.000000e+00> : vector<1xf32>
    %53 = vector.multi_reduction <add>, %52, %cst_12 [1, 2] : vector<1x32x1xf32> to vector<1xf32>
    %54 = vector.shape_cast %53 : vector<1xf32> to vector<1x1x1xf32>
    %55 = vector.extract %54[0, 0, 0] : f32 from vector<1x1x1xf32>
    %56 = tpu.iota {dimensions = array<i32: 0>} : vector<8x128xi32>
    %57 = tpu.iota {dimensions = array<i32: 1>} : vector<8x128xi32>
    %c0_i32_13 = arith.constant 0 : i32
    %58 = vector.broadcast %c0_i32_13 : i32 to vector<8x128xi32>
    %59 = arith.cmpi eq, %56, %58 : vector<8x128xi32>
    %c0_i32_14 = arith.constant 0 : i32
    %60 = vector.broadcast %c0_i32_14 : i32 to vector<8x128xi32>
    %61 = arith.cmpi eq, %57, %60 : vector<8x128xi32>
    %62 = arith.andi %59, %61 : vector<8x128xi1>
    %c1_i32 = arith.constant 1 : i32
    %63 = vector.broadcast %c1_i32 : i32 to vector<8x128xi32>
    %64 = arith.cmpi eq, %56, %63 : vector<8x128xi32>
    %c0_i32_15 = arith.constant 0 : i32
    %65 = vector.broadcast %c0_i32_15 : i32 to vector<8x128xi32>
    %66 = arith.cmpi eq, %57, %65 : vector<8x128xi32>
    %67 = arith.andi %64, %66 : vector<8x128xi1>
    %cst_16 = arith.constant 0.000000e+00 : f32
    %68 = vector.broadcast %55 : f32 to vector<8x128xf32>
    %69 = vector.broadcast %cst_16 : f32 to vector<8x128xf32>
    %70 = arith.select %67, %68, %69 : vector<8x128xi1>, vector<8x128xf32>
    %71 = vector.broadcast %49 : f32 to vector<8x128xf32>
    %72 = arith.select %62, %71, %70 : vector<8x128xi1>, vector<8x128xf32>
    %c0_17 = arith.constant 0 : index
    %c0_18 = arith.constant 0 : index
    %73 = vector.load %arg3[%c0_17, %c0_18] : memref<8x128xf32, #tpu.memory_space<vmem>>, vector<8x128xf32>
    tpu.vector_store %arg3[%c0_17, %c0_18], %72 {strides = array<i32>} : memref<8x128xf32, #tpu.memory_space<vmem>>, vector<8x128xf32>,
    return
  }
  func.func @transform_0(%arg0: i32) -> (i32, i32) {
    %c0_i32 = arith.constant 0 : i32
    %c0_i32_0 = arith.constant 0 : i32
    return %arg0, %c0_i32 : i32, i32
  }
  func.func @transform_1(%arg0: i32) -> (i32, i32) {
    %c0_i32 = arith.constant 0 : i32
    %c0_i32_0 = arith.constant 0 : i32
    return %arg0, %c0_i32 : i32, i32
  }
  func.func @transform_2(%arg0: i32) -> (i32, i32) {
    %c0_i32 = arith.constant 0 : i32
    %c0_i32_0 = arith.constant 0 : i32
    return %c0_i32, %arg0 : i32, i32
  }
}

</mosaic_0001>

<llo_original>
// kernel: tpu_custom_call.1
$region0: #{tpu_custom_call.1}
  #allocation0 [shape = 'u32[]', space=smem, size = 0x4, offset = 0x4, fixed_abs, tag = 'smem constant byte address 0x4 - core index']
  #allocation1 [shape = 'u32[144,128]{1,0:T(1,128)}', space=vmem, size = 0x12000, scoped, tag = 'internal scratch']
  %s0 = inlined_call_operand.vmem [shape: f32[37,128], index: 0, kind: input, shape index: {}]
  %s1 = inlined_call_operand.vmem [shape: s32[37,1], index: 1, kind: input, shape index: {}]
  %s2 = inlined_call_operand.hbm [shape: f32[8,256], index: 2, kind: output, shape index: {}]
  %s3 = sld [smem:[#allocation0]]
  $region41: #{tpu_custom_call.1} parent=0
    _
  %s5 = ssub.s32 1, %s3
  %s6 = scalar_select 0, %s5, %s3
  $region1: #{tpu_custom_call.1} parent=0
    #allocation2 [shape = 'u8[8192]{0}', space=vmem, size = 0x2000, scoped, tag = 'output window, operand 0']
    #allocation3 [shape = 's32[2]{0}', space=sflag, size = 0x8, scoped, tag = 'scoped memory for tpu_custom_call.1']
    %7 = vsyncpa [#allocation3], 0
    %s8 = scalar_lea.sflag [#allocation3], 1
    %9 = vsyncpa %s8, 0
    loop: start=0, step=1, limit=4
    $region2: #{tpu_custom_call.1} parent=1 // loop_pre_header
      _
    $region3: #{tpu_custom_call.1} parent=1 // loop_header
      %s11 = sphi 0, %s15
      %p12 = scmp.ge.s32.totalorder %s11, 4
      %s21 = sphi 0, %s23
      %s24 = sphi 0, %s21
      %s25 = sphi 0, %s24
      %s41 = sphi 0, %s25
      %s47 = sphi 0, %s49
      %s50 = sphi 0, %s47
      %s51 = sphi 0, %s50
      %s67 = sphi 0, %s51
      %s73 = sphi 0, %s75
      %s76 = sphi 0, %s73
      %s77 = sphi 0, %s76
      %s93 = sphi 0, %s77
    $region4: #{tpu_custom_call.1} parent=1 // loop_header_branch
      %14 = sbr.rel (%p12) target = $region8
    $region5: #{tpu_custom_call.1} parent=1 // loop_body
      %s16 = ssub.s32 %s11, 1
      %s17 = ssub.s32 %s11, 2
      %s18 = sadd.s32 %s11, 1
      %s19 = ssub.s32 %s11, %s18
      %p20 = scmp.eq.s32.totalorder %s19, 0
      %s22 = sadd.s32 %s21, 1
      %s23 = scalar_select %p20, %s21, %s22
      %p26 = pneg %p20
      %p27 = scmp.eq.s32.totalorder %s11, 1
      %p28 = por %p26, %p27
      %p29 = scmp.ne.s32.totalorder %s21, %s24
      %p30 = scmp.eq.s32.totalorder %s11, 0
      %p31 = por %p29, %p30
      %p32 = scmp.ne.s32.totalorder %s21, %s24
      %p33 = scmp.eq.s32.totalorder %s16, 1
      %p34 = por %p32, %p33
      %p35 = scmp.ne.s32.totalorder %s24, %s25
      %p36 = scmp.eq.s32.totalorder %s16, 0
      %p37 = por %p35, %p36
      %p38 = scmp.ne.s32.totalorder %s24, %s25
      %p39 = scmp.eq.s32.totalorder %s17, 1
      %p40 = por %p38, %p39
      %p42 = scmp.ne.s32.totalorder %s25, %s41
      %p43 = scmp.eq.s32.totalorder %s17, 0
      %p44 = por %p42, %p43
      %s45 = ssub.s32 %s11, %s18
      %p46 = scmp.eq.s32.totalorder %s45, 0
      %s48 = sadd.s32 %s47, 1
      %s49 = scalar_select %p46, %s47, %s48
      %p52 = pneg %p46
      %p53 = scmp.eq.s32.totalorder %s11, 1
      %p54 = por %p52, %p53
      %p55 = scmp.ne.s32.totalorder %s47, %s50
      %p56 = scmp.eq.s32.totalorder %s11, 0
      %p57 = por %p55, %p56
      %p58 = scmp.ne.s32.totalorder %s47, %s50
      %p59 = scmp.eq.s32.totalorder %s16, 1
      %p60 = por %p58, %p59
      %p61 = scmp.ne.s32.totalorder %s50, %s51
      %p62 = scmp.eq.s32.totalorder %s16, 0
      %p63 = por %p61, %p62
      %p64 = scmp.ne.s32.totalorder %s50, %s51
      %p65 = scmp.eq.s32.totalorder %s17, 1
      %p66 = por %p64, %p65
      %p68 = scmp.ne.s32.totalorder %s51, %s67
      %p69 = scmp.eq.s32.totalorder %s17, 0
      %p70 = por %p68, %p69
      %s71 = ssub.s32 %s11, %s18
      %p72 = scmp.eq.s32.totalorder %s71, 0
      %s74 = sadd.s32 %s73, 1
      %s75 = scalar_select %p72, %s73, %s74
      %p78 = pneg %p72
      %p79 = scmp.eq.s32.totalorder %s11, 1
      %p80 = por %p78, %p79
      %p81 = scmp.ne.s32.totalorder %s73, %s76
      %p82 = scmp.eq.s32.totalorder %s11, 0
      %p83 = por %p81, %p82
      %p84 = scmp.ne.s32.totalorder %s73, %s76
      %p85 = scmp.eq.s32.totalorder %s16, 1
      %p86 = por %p84, %p85
      %p87 = scmp.ne.s32.totalorder %s76, %s77
      %p88 = scmp.eq.s32.totalorder %s16, 0
      %p89 = por %p87, %p88
      %p90 = scmp.ne.s32.totalorder %s76, %s77
      %p91 = scmp.eq.s32.totalorder %s17, 1
      %p92 = por %p90, %p91
      %p94 = scmp.ne.s32.totalorder %s77, %s93
      %p95 = scmp.eq.s32.totalorder %s17, 0
      %p96 = por %p94, %p95
      %p97 = scmp.le.s32.totalorder 1, %s11
      %p98 = scmp.lt.s32.totalorder %s11, 3
      %p99 = pnand %p97, %p98
      %p100 = pneg %p99
      // Predicated region
      $region9: #{tpu_custom_call.1} parent=5 // pred_check
        _
      $region10: #{tpu_custom_call.1} parent=5 // pred_check_branch
        %102 = sbr.rel (%p99) target = $region12
      $region11: #{tpu_custom_call.1} parent=5 // pred_region
        %s103 = ssub.s32 %s11, 1
      $region12: #{tpu_custom_call.1} parent=5 // pred_fallthru
        _
      %p104 = scmp.lt.s32.totalorder %s11, 2
      // Predicated region
      $region13: #{tpu_custom_call.1} parent=5 // pred_check
        %p105 = pneg %p104
      $region14: #{tpu_custom_call.1} parent=5 // pred_check_branch
        %107 = sbr.rel (%p105) target = $region16
      $region15: #{tpu_custom_call.1} parent=5 // pred_region
        // Predicated region
        $region17: #{tpu_custom_call.1} parent=15 // pred_check
          %p108 = pneg %p31
        $region18: #{tpu_custom_call.1} parent=15 // pred_check_branch
          %110 = sbr.rel (%p108) target = $region20
        $region19: #{tpu_custom_call.1} parent=15 // pred_region
          %s111 = smul.u32 4, %s11
          %s112 = ssub.s32 5, %s111
          %p113 = scmp.lt.s32.totalorder %s112, 4
          %s114 = scalar_select %p113, %s112, 4
          %s115 = smul.u32 128, %s114
          %p116 = scmp.lt.s32.totalorder %s111, 4
          %s117 = scalar_select %p116, %s111, 4
          %s118 = smul.addr %s117, 8
          %s119 = scalar_lea.vmem %s0, %s118
          %s120 = smul.u32 4, %s11
          %s121 = ssub.s32 5, %s120
          %p122 = scmp.lt.s32.totalorder %s121, 4
          %s123 = scalar_select %p122, %s121, 4
          %s124 = smul.u32 128, %s123
        $region20: #{tpu_custom_call.1} parent=15 // pred_fallthru
          _
        // Predicated region
        $region21: #{tpu_custom_call.1} parent=15 // pred_check
          %p125 = pneg %p57
        $region22: #{tpu_custom_call.1} parent=15 // pred_check_branch
          %127 = sbr.rel (%p125) target = $region24
        $region23: #{tpu_custom_call.1} parent=15 // pred_region
          %s128 = smul.u32 4, %s11
          %s129 = ssub.s32 5, %s128
          %p130 = scmp.lt.s32.totalorder %s129, 4
          %s131 = scalar_select %p130, %s129, 4
          %s132 = smul.u32 128, %s131
          %p133 = scmp.lt.s32.totalorder %s128, 4
          %s134 = scalar_select %p133, %s128, 4
          %s135 = smul.addr %s134, 8
          %s136 = scalar_lea.vmem %s1, %s135
          %s137 = smul.u32 4, %s11
          %s138 = ssub.s32 5, %s137
          %p139 = scmp.lt.s32.totalorder %s138, 4
          %s140 = scalar_select %p139, %s138, 4
          %s141 = smul.u32 128, %s140
        $region24: #{tpu_custom_call.1} parent=15 // pred_fallthru
          _
      $region16: #{tpu_custom_call.1} parent=5 // pred_fallthru
        _
      %p142 = scmp.le.s32.totalorder 1, %s11
      %p143 = scmp.lt.s32.totalorder %s11, 3
      %p144 = pnand %p142, %p143
      %p145 = pneg %p144
      // Predicated region
      $region25: #{tpu_custom_call.1} parent=5 // pred_check
        _
      $region26: #{tpu_custom_call.1} parent=5 // pred_check_branch
        %147 = sbr.rel (%p144) target = $region28
      $region27: #{tpu_custom_call.1} parent=5 // pred_region
        %s148 = ssub.s32 %s11, 1
        %s149 = smul.u32 4, %s16
        %s150 = ssub.s32 5, %s149
        %p151 = scmp.lt.s32.totalorder %s150, 4
        %s152 = scalar_select %p151, %s150, 4
        %s153 = smul.u32 128, %s152
        %p154 = scmp.lt.s32.totalorder %s149, 4
        %s155 = scalar_select %p154, %s149, 4
        %s156 = smul.addr %s155, 8
        %s157 = scalar_lea.vmem %s0, %s156
        %p158 = pneg %p37
        %p159 = pneg %p34
        %s160 = smul.u32 4, %s16
        %s161 = ssub.s32 5, %s160
        %p162 = scmp.lt.s32.totalorder %s161, 4
        %s163 = scalar_select %p162, %s161, 4
        %s164 = smul.u32 128, %s163
        %p165 = scmp.lt.s32.totalorder %s160, 4
        %s166 = scalar_select %p165, %s160, 4
        %s167 = smul.addr %s166, 8
        %s168 = scalar_lea.vmem %s1, %s167
        %p169 = pneg %p63
        %p170 = pneg %p60
        %p171 = pneg %p89
        %p172 = pneg %p86
        %s173 = sand.u32 %s76, 1
        %s174 = scalar_lea.sflag [#allocation3], %s173
        %s175 = sand.u32 %s76, 1
        %s176 = smul.addr %s175, 8
        %s177 = scalar_lea.vmem [#allocation2], %s176
        %s178 = smul.u32 4, %s16
        %s179 = ssub.s32 5, %s178
        %p180 = scmp.lt.s32.totalorder %s179, 4
        %s181 = scalar_select %p180, %s179, 4
        %s182 = smul.u32 128, %s181
        %p183 = scmp.lt.s32.totalorder %s178, 4
        %s184 = scalar_select %p183, %s178, 4
        %s185 = smul.addr %s184, 8
        %s186 = scalar_lea.vmem %s0, %s185
        %s187 = smul.u32 4, %s16
        %s188 = ssub.s32 5, %s187
        %p189 = scmp.lt.s32.totalorder %s188, 4
        %s190 = scalar_select %p189, %s188, 4
        %s191 = smul.u32 128, %s190
        %s192 = smul.u32 4, %s16
        %s193 = ssub.s32 5, %s192
        %p194 = scmp.lt.s32.totalorder %s193, 4
        %s195 = scalar_select %p194, %s193, 4
        %s196 = smul.u32 128, %s195
        %p197 = scmp.lt.s32.totalorder %s192, 4
        %s198 = scalar_select %p197, %s192, 4
        %s199 = smul.addr %s198, 8
        %s200 = scalar_lea.vmem %s1, %s199
        %s201 = smul.u32 4, %s16
        %s202 = ssub.s32 5, %s201
        %p203 = scmp.lt.s32.totalorder %s202, 4
        %s204 = scalar_select %p203, %s202, 4
        %s205 = smul.u32 128, %s204
        %v206 = vld [vmem:[%s186] sm:$0xff]
        %v207 = vld [vmem:[%s186 + $0x8] sm:$0xff]
        %v208 = vld [vmem:[%s186 + $0x10] sm:$0xff]
        %v209 = vld [vmem:[%s186 + $0x18] sm:$0xff]
        %v210 = vld [vmem:[%s200] sm:$0xff]
        %v211 = vld [vmem:[%s200 + $0x8] sm:$0xff]
        %v212 = vld [vmem:[%s200 + $0x10] sm:$0xff]
        %v213 = vld [vmem:[%s200 + $0x18] sm:$0xff]
        %214 = vmax.xlane.f32.xlu0 %v206
        %v215 = vpop.xlane.xlu0 %214
        %216 = vmax.xlane.f32.xlu0 %v207
        %v217 = vpop.xlane.xlu0 %216
        %218 = vmax.xlane.f32.xlu0 %v208
        %v219 = vpop.xlane.xlu0 %218
        %220 = vmax.xlane.f32.xlu0 %v209
        %v221 = vpop.xlane.xlu0 %220
        %v222 = vsub.f32 %v206, %v215
        %v223 = vsub.f32 %v207, %v217
        %v224 = vsub.f32 %v208, %v219
        %v225 = vsub.f32 %v209, %v221
        %v226 = vmul.f32 %v222, 1.442695
        %v227 = vpow.pop %v226
        %v228 = vmul.f32 %v223, 1.442695
        %v229 = vpow.pop %v228
        %v230 = vmul.f32 %v224, 1.442695
        %v231 = vpow.pop %v230
        %v232 = vmul.f32 %v225, 1.442695
        %v233 = vpow.pop %v232
        %234 = vadd.xlane.f32.xlu0 %v227
        %v235 = vpop.xlane.xlu0 %234
        %236 = vadd.xlane.f32.xlu0 %v229
        %v237 = vpop.xlane.xlu0 %236
        %238 = vadd.xlane.f32.xlu0 %v231
        %v239 = vpop.xlane.xlu0 %238
        %240 = vadd.xlane.f32.xlu0 %v233
        %v241 = vpop.xlane.xlu0 %240
        %v242 = vlog2.pop %v235
        %v243 = vmul.f32 %v242, 0.6931472
        %v244 = vlog2.pop %v237
        %v245 = vmul.f32 %v244, 0.6931472
        %v246 = vlog2.pop %v239
        %v247 = vmul.f32 %v246, 0.6931472
        %v248 = vlog2.pop %v241
        %v249 = vmul.f32 %v248, 0.6931472
        %v250 = vlaneseq
        %v251 = vand.u32 %v250, 127
        %252 = vset.pattern.permute.xlu0 0
        %253 = vperm.xlu0 %252, %v210
        %v254 = vpop.permute.xlu0 %253
        %255 = vset.pattern.permute.xlu0 0
        %256 = vperm.xlu0 %255, %v211
        %v257 = vpop.permute.xlu0 %256
        %258 = vset.pattern.permute.xlu0 0
        %259 = vperm.xlu0 %258, %v212
        %v260 = vpop.permute.xlu0 %259
        %261 = vset.pattern.permute.xlu0 0
        %262 = vperm.xlu0 %261, %v213
        %v263 = vpop.permute.xlu0 %262
        %v264 = vsub.s32 %v251, %v254
        %v265 = vsub.s32 %v251, %v257
        %v266 = vsub.s32 %v251, %v260
        %v267 = vsub.s32 %v251, %v263
        %vm268 = vcmp.eq.s32.totalorder %v264, 0
        %vm269 = vcmp.eq.s32.totalorder %v265, 0
        %vm270 = vcmp.eq.s32.totalorder %v266, 0
        %vm271 = vcmp.eq.s32.totalorder %v267, 0
        %vm272 = vcmp.lt.s32.totalorder %v264, 0
        %v273 = vsub.s32 0, %v264
        %v274 = vsel %vm272, %v273, %v264
        %vm275 = vcmp.lt.s32.totalorder %v265, 0
        %v276 = vsub.s32 0, %v265
        %v277 = vsel %vm275, %v276, %v265
        %vm278 = vcmp.lt.s32.totalorder %v266, 0
        %v279 = vsub.s32 0, %v266
        %v280 = vsel %vm278, %v279, %v266
        %vm281 = vcmp.lt.s32.totalorder %v267, 0
        %v282 = vsub.s32 0, %v267
        %v283 = vsel %vm281, %v282, %v267
        %v284 = vcvt.s32.f32 %v274
        %v285 = vcvt.s32.f32 %v277
        %v286 = vcvt.s32.f32 %v280
        %v287 = vcvt.s32.f32 %v283
        %v288 = vmax.f32 %v284, 1.0
        %v289 = vmax.f32 %v285, 1.0
        %v290 = vmax.f32 %v286, 1.0
        %v291 = vmax.f32 %v287, 1.0
        %v292 = vrcp.pop %v288
        %v293 = vrcp.pop %v289
        %v294 = vrcp.pop %v290
        %v295 = vrcp.pop %v291
        %296 = vadd.xlane.f32.xlu0 %v292
        %v297 = vpop.xlane.xlu0 %296
        %298 = vadd.xlane.f32.xlu0 %v293
        %v299 = vpop.xlane.xlu0 %298
        %300 = vadd.xlane.f32.xlu0 %v294
        %v301 = vpop.xlane.xlu0 %300
        %302 = vadd.xlane.f32.xlu0 %v295
        %v303 = vpop.xlane.xlu0 %302
        %v304 = vsub.f32 %v297, 1.0
        %v305 = vsub.f32 %v299, 1.0
        %v306 = vsub.f32 %v301, 1.0
        %v307 = vsub.f32 %v303, 1.0
        %v308 = vrcp.pop %v304
        %v309 = vrcp.pop %v305
        %v310 = vrcp.pop %v306
        %v311 = vrcp.pop %v307
        %v312 = vmul.f32 %v308, 0.1
        %v313 = vmul.f32 %v309, 0.1
        %v314 = vmul.f32 %v310, 0.1
        %v315 = vmul.f32 %v311, 0.1
        %v316 = vmul.f32 %v292, %v312
        %v317 = vmul.f32 %v293, %v313
        %v318 = vmul.f32 %v294, %v314
        %v319 = vmul.f32 %v295, %v315
        %v320 = vsel %vm268, 0.9, %v316
        %v321 = vsel %vm269, 0.9, %v317
        %v322 = vsel %vm270, 0.9, %v318
        %v323 = vsel %vm271, 0.9, %v319
        %v324 = vmul.f32 %v320, %v222
        %v325 = vmul.f32 %v321, %v223
        %v326 = vmul.f32 %v322, %v224
        %v327 = vmul.f32 %v323, %v225
        %328 = vadd.xlane.f32.xlu0 %v324
        %v329 = vpop.xlane.xlu0 %328
        %330 = vadd.xlane.f32.xlu0 %v325
        %v331 = vpop.xlane.xlu0 %330
        %332 = vadd.xlane.f32.xlu0 %v326
        %v333 = vpop.xlane.xlu0 %332
        %334 = vadd.xlane.f32.xlu0 %v327
        %v335 = vpop.xlane.xlu0 %334
        %v336 = vsub.f32 %v243, %v329
        %v337 = vsub.f32 %v245, %v331
        %v338 = vsub.f32 %v247, %v333
        %v339 = vsub.f32 %v249, %v335
        %v340 = vlaneseq
        %v341 = vshrl.u32 %v340, 7
        %v342 = vadd.s32 %v341, 8
        %v343 = vadd.s32 %v341, 16
        %v344 = vadd.s32 %v341, 24
        %vm345 = vcmp.ne.s32.totalorder %v210, 4294967196
        %vm346 = vcmp.ne.s32.totalorder %v211, 4294967196
        %vm347 = vcmp.ne.s32.totalorder %v212, 4294967196
        %vm348 = vcmp.ne.s32.totalorder %v213, 4294967196
        %s349 = smul.u32 %s16, 32
        %v350 = vstv %s349
        %v351 = vadd.s32 %v350, %v341
        %v352 = vadd.s32 %v350, %v342
        %v353 = vadd.s32 %v350, %v343
        %v354 = vadd.s32 %v350, %v344
        %vm355 = vcmp.lt.s32.totalorder %v351, 37
        %vm356 = vcmp.lt.s32.totalorder %v352, 37
        %vm357 = vcmp.lt.s32.totalorder %v353, 37
        %vm358 = vcmp.lt.s32.totalorder %v354, 37
        %vm359 = vmand %vm345, %vm355
        %vm360 = vmand %vm346, %vm356
        %vm361 = vmand %vm347, %vm357
        %vm362 = vmand %vm348, %vm358
        %v363 = vsel %vm359, %v336, 0.0
        %v364 = vsel %vm360, %v337, 0.0
        %v365 = vsel %vm361, %v338, 0.0
        %v366 = vsel %vm362, %v339, 0.0
        %vm367 = vcmask 7168
        %v368 = vsel %vm367, %v363, 0.0
        %v369 = vsel %vm367, %v364, 0.0
        %v370 = vadd.f32 %v368, %v369
        %v371 = vsel %vm367, %v365, 0.0
        %v372 = vadd.f32 %v370, %v371
        %v373 = vsel %vm367, %v366, 0.0
        %v374 = vadd.f32 %v372, %v373
        %375 = vadd.xlane.f32.xlu0 %v374
        %v376 = vpop.xlane.xlu0 %375
        %v377 = vrot.slane %v376, 4
        %v378 = vadd.f32 %v376, %v377
        %v379 = vrot.slane %v378, 2
        %v380 = vadd.f32 %v378, %v379
        %v381 = vrot.slane %v380, 1
        %v382 = vadd.f32 %v380, %v381
        %s383 = vtos %v382
        %v384 = vsel %vm359, 1, 0
        %v385 = vsel %vm360, 1, 0
        %v386 = vsel %vm361, 1, 0
        %v387 = vsel %vm362, 1, 0
        %v388 = vcvt.s32.f32 %v384
        %v389 = vcvt.s32.f32 %v385
        %v390 = vcvt.s32.f32 %v386
        %v391 = vcvt.s32.f32 %v387
        %v392 = vsel %vm367, %v388, 0.0
        %v393 = vsel %vm367, %v389, 0.0
        %v394 = vadd.f32 %v392, %v393
        %v395 = vsel %vm367, %v390, 0.0
        %v396 = vadd.f32 %v394, %v395
        %v397 = vsel %vm367, %v391, 0.0
        %v398 = vadd.f32 %v396, %v397
        %399 = vadd.xlane.f32.xlu0 %v398
        %v400 = vpop.xlane.xlu0 %399
        %v401 = vrot.slane %v400, 4
        %v402 = vadd.f32 %v400, %v401
        %v403 = vrot.slane %v402, 2
        %v404 = vadd.f32 %v402, %v403
        %v405 = vrot.slane %v404, 1
        %v406 = vadd.f32 %v404, %v405
        %s407 = vtos %v406
        %vm408 = vcmp.eq.s32.totalorder %v341, 0
        %vm409 = vcmp.eq.s32.totalorder %v251, 0
        %vm410 = vmand %vm408, %vm409
        %vm411 = vcmp.eq.s32.totalorder %v341, 1
        %vm412 = vmand %vm411, %vm409
        %v413 = vstv %s407
        %v414 = vsel %vm412, %v413, 0.0
        %v415 = vstv %s383
        %v416 = vsel %vm410, %v415, %v414
        %417 = vst [vmem:[%s177] sm:$0xff] %v416
        %s418 = sand.u32 %s76, 1
        %s419 = scalar_lea.sflag [#allocation3], %s418
        %s420 = sand.u32 %s76, 1
        %s421 = smul.addr %s420, 8
        %s422 = scalar_lea.vmem [#allocation2], %s421
        // Predicated region
        $region29: #{tpu_custom_call.1} parent=27 // pred_check
          %p423 = pneg %p86
        $region30: #{tpu_custom_call.1} parent=27 // pred_check_branch
          %425 = sbr.rel (%p423) target = $region32
        $region31: #{tpu_custom_call.1} parent=27 // pred_region
          %s427 = ssub.s32 128, 128
          %428 = vsyncadd %s419, %s427
          %s429 = smul.addr %s16, 128
          %s430 = scalar_lea.hbm %s2, %s429
          %s432 = sshll.u32 %s422, 4
          %s433 = int_to_ptr.vmem [resolvable:$true] %s432
          %435 = dma.vmem_to_hbm [thread:$0]  %s433, 128, %s430, %s419
        $region32: #{tpu_custom_call.1} parent=27 // pred_fallthru
          _
      $region28: #{tpu_custom_call.1} parent=5 // pred_fallthru
        _
      %p436 = scmp.le.s32.totalorder 2, %s11
      // Predicated region
      $region33: #{tpu_custom_call.1} parent=5 // pred_check
        %p437 = pneg %p436
      $region34: #{tpu_custom_call.1} parent=5 // pred_check_branch
        %439 = sbr.rel (%p437) target = $region36
      $region35: #{tpu_custom_call.1} parent=5 // pred_region
        %s440 = ssub.s32 %s11, 2
        // Predicated region
        $region37: #{tpu_custom_call.1} parent=35 // pred_check
          %p441 = pneg %p92
        $region38: #{tpu_custom_call.1} parent=35 // pred_check_branch
          %443 = sbr.rel (%p441) target = $region40
        $region39: #{tpu_custom_call.1} parent=35 // pred_region
          %s444 = sand.u32 %s77, 1
          %s445 = scalar_lea.sflag [#allocation3], %s444
          %s446 = sand.u32 %s77, 1
          %s447 = smul.addr %s446, 8
          %s448 = scalar_lea.vmem [#allocation2], %s447
          %449 = dma.done %s445, 128
        $region40: #{tpu_custom_call.1} parent=35 // pred_fallthru
          _
      $region36: #{tpu_custom_call.1} parent=5 // pred_fallthru
        _
    $region6: #{tpu_custom_call.1} parent=1 // loop_footer
      %s15 = sadd.s32 1, %s11
    $region7: #{tpu_custom_call.1} parent=1 // loop_footer_branch
      %10 = sbr.rel target = $region3
    $region8: #{tpu_custom_call.1} parent=1 // loop_exit
      _
    %450 = vsyncpa [#allocation3], 1
    %s451 = scalar_lea.sflag [#allocation3], 1
    %452 = vsyncpa %s451, 1

</llo_original>
